<compile_context>
chip_gen: v7x
topology: tpu7x:2x2x1
jax: 0.10.0
libtpu: 0.0.40
codegen_flags: <defaults>
</compile_context>

<pallas_src>
import functools

import jax
import jax.numpy as jnp
from jax.experimental import pallas as pl
from jax.experimental.pallas import tpu as pltpu


def _matmul_kernel_single_k(x_ref, w_ref, o_ref):
    # K fits in one tile: single MXU dot, accumulate in f32, store once.
    o_ref[...] = jnp.dot(
        x_ref[...], w_ref[...], preferred_element_type=jnp.float32
    ).astype(o_ref.dtype)


def _matmul_kernel_multi_k(x_ref, w_ref, o_ref, acc_ref):
    # x_ref: (tm, tk), w_ref: (tk, tn), o_ref: (tm, tn), acc_ref: (tm, tn) f32
    @pl.when(pl.program_id(2) == 0)
    def _():
        acc_ref[...] = jnp.zeros_like(acc_ref)

    acc_ref[...] += jnp.dot(
        x_ref[...], w_ref[...], preferred_element_type=jnp.float32
    )

    @pl.when(pl.program_id(2) == pl.num_programs(2) - 1)
    def _():
        o_ref[...] = acc_ref[...].astype(o_ref.dtype)


def _round_up(v, mult):
    return ((v + mult - 1) // mult) * mult


@functools.partial(jax.jit, static_argnames=("tm", "tn", "tk"))
def linear_forward(x, weight, *, tm=256, tn=256, tk=512):
    """y = x @ weight.  x: (B, m, in_f), weight: (in_f, out_f) -> (B, m, out_f)."""
    B, m, in_f = x.shape
    in_f_w, out_f = weight.shape
    assert in_f == in_f_w

    M, K, N = B * m, in_f, out_f
    x2d = x.reshape(M, K)  # glue reshape in plain JAX (fused under jit)

    # Shrink tiles for small problems while keeping (8,128)-aligned blocks.
    tm = min(tm, _round_up(M, 8))
    tk = min(tk, _round_up(K, 128))
    tn = min(tn, _round_up(N, 128))

    Mp, Kp, Np = _round_up(M, tm), _round_up(K, tk), _round_up(N, tn)

    # Zero-pad: extra K contributes 0 to the dot; extra M/N rows/cols are
    # sliced off afterwards.  Padding N to a multiple of 128 keeps the output
    # lane-dense (unmasked stores).
    x_p = x2d if (Mp == M and Kp == K) else jnp.pad(x2d, ((0, Mp - M), (0, Kp - K)))
    w_p = weight if (Kp == K and Np == N) else jnp.pad(weight, ((0, Kp - K), (0, Np - N)))

    itemsize = jnp.dtype(x.dtype).itemsize
    cost = pl.CostEstimate(
        flops=2 * Mp * Np * Kp,
        transcendentals=0,
        bytes_accessed=(Mp * Kp + Kp * Np + Mp * Np) * itemsize,
    )

    n_k = Kp // tk

    if n_k == 1:
        # Fast path: no reduction grid axis, no accumulator scratch.
        out_p = pl.pallas_call(
            _matmul_kernel_single_k,
            out_shape=jax.ShapeDtypeStruct((Mp, Np), x.dtype),
            grid_spec=pltpu.PrefetchScalarGridSpec(
                num_scalar_prefetch=0,
                grid=(Mp // tm, Np // tn),
                in_specs=[
                    pl.BlockSpec((tm, tk), lambda i, j: (i, 0)),
                    pl.BlockSpec((tk, tn), lambda i, j: (0, j)),
                ],
                out_specs=pl.BlockSpec((tm, tn), lambda i, j: (i, j)),
            ),
            compiler_params=pltpu.CompilerParams(
                dimension_semantics=("parallel", "parallel"),
            ),
            cost_estimate=cost,
        )(x_p, w_p)
    else:
        out_p = pl.pallas_call(
            _matmul_kernel_multi_k,
            out_shape=jax.ShapeDtypeStruct((Mp, Np), x.dtype),
            grid_spec=pltpu.PrefetchScalarGridSpec(
                num_scalar_prefetch=0,
                grid=(Mp // tm, Np // tn, n_k),
                in_specs=[
                    pl.BlockSpec((tm, tk), lambda i, j, k: (i, k)),
                    pl.BlockSpec((tk, tn), lambda i, j, k: (k, j)),
                ],
                out_specs=pl.BlockSpec((tm, tn), lambda i, j, k: (i, j)),
                scratch_shapes=[pltpu.VMEM((tm, tn), jnp.float32)],
            ),
            compiler_params=pltpu.CompilerParams(
                dimension_semantics=("parallel", "parallel", "arbitrary"),
            ),
            cost_estimate=cost,
        )(x_p, w_p)

    return out_p[:M, :N].reshape(B, m, N)


if __name__ == "__main__":
    # Deterministic small shapes consistent with the module's random ranges:
    # in_features in [2,4], out_features in [5,8], B in [1,3], m in [2,4].
    in_features = 3
    out_features = 6
    B = 2
    m = 3

    key = jax.random.PRNGKey(0)
    kx, kw, kb = jax.random.split(key, 3)

    x = jax.random.normal(kx, (B, m, in_features), dtype=jnp.float32)
    # weight ~ U[-1/in_f, 1/in_f], like torch.rand(...) * (2/in_f) - 1/in_f
    weight = (
        jax.random.uniform(kw, (in_features, out_features), dtype=jnp.float32)
        * (2.0 / in_features)
        - 1.0 / in_features
    )
    # bias is a module parameter but unused in forward; kept for parity only.
    bias = (
        jax.random.normal(kb, (out_features,), dtype=jnp.float32)
        * (2.0 / in_features)
        - 1.0 / in_features
    )

    y = linear_forward(x, weight)
    jax.block_until_ready(y)

    y_ref = x @ weight
    assert y.shape == (B, m, out_features)
    assert jnp.allclose(y, y_ref, atol=1e-5, rtol=1e-5)

    # Secondary check exercising the multi-block, multi-K reduction path
    # (grid (1, 3, 2)) plus ragged-N padding.
    kx2, kw2 = jax.random.split(jax.random.PRNGKey(1))
    x2 = jax.random.normal(kx2, (2, 128, 1024), dtype=jnp.float32)
    w2 = jax.random.normal(kw2, (1024, 384), dtype=jnp.float32) * 0.05
    y2 = linear_forward(x2, w2)
    jax.block_until_ready(y2)
    assert jnp.allclose(y2, x2 @ w2, atol=1e-3, rtol=1e-3)

    print("KERNEL_OK")
</pallas_src>

<mosaic_0001>
module attributes {stable_mosaic.version = 11 : i64} {
  func.func @_matmul_kernel_single_k(%arg0: i32, %arg1: i32, %arg2: memref<8x128xf32, #tpu.memory_space<vmem>>, %arg3: memref<128x128xf32, #tpu.memory_space<vmem>>, %arg4: memref<8x128xf32, #tpu.memory_space<vmem>>) attributes {dimension_semantics = [#tpu.dimension_semantics<parallel>, #tpu.dimension_semantics<parallel>], iteration_bounds = array<i64: 1, 1>, scalar_prefetch = 0 : i64, scratch_operands = 0 : i64, tpu.core_type = #tpu.core_type<tc>, window_params = [{transform_indices = @transform_0, window_bounds = array<i64: 8, 128>}, {transform_indices = @transform_1, window_bounds = array<i64: 128, 128>}, {transform_indices = @transform_2, window_bounds = array<i64: 8, 128>}]} {
    %c0 = arith.constant 0 : index
    %c0_0 = arith.constant 0 : index
    %0 = vector.load %arg2[%c0, %c0_0] : memref<8x128xf32, #tpu.memory_space<vmem>>, vector<8x128xf32>
    %c0_1 = arith.constant 0 : index
    %c0_2 = arith.constant 0 : index
    %1 = vector.load %arg3[%c0_1, %c0_2] : memref<128x128xf32, #tpu.memory_space<vmem>>, vector<128x128xf32>
    %cst = arith.constant dense<0.000000e+00> : vector<8x128xf32>
    %2 = tpu.matmul %0, %1, %cst {dimension_numbers = #tpu.dot_dimension_numbers<[1], [0], [0], [1], [0, 0, 1, 1], [], []>} : vector<8x128xf32>, vector<128x128xf32>, vector<8x128xf32> -> vector<8x128xf32>
    %c0_3 = arith.constant 0 : index
    %c0_4 = arith.constant 0 : index
    %3 = vector.load %arg4[%c0_3, %c0_4] : memref<8x128xf32, #tpu.memory_space<vmem>>, vector<8x128xf32>
    tpu.vector_store %arg4[%c0_3, %c0_4], %2 {strides = array<i32>} : memref<8x128xf32, #tpu.memory_space<vmem>>, vector<8x128xf32>,
    return
  }
  func.func @transform_0(%arg0: i32, %arg1: i32) -> (i32, i32) {
    %c0_i32 = arith.constant 0 : i32
    %c0_i32_0 = arith.constant 0 : i32
    return %arg0, %c0_i32 : i32, i32
  }
  func.func @transform_1(%arg0: i32, %arg1: i32) -> (i32, i32) {
    %c0_i32 = arith.constant 0 : i32
    %c0_i32_0 = arith.constant 0 : i32
    return %c0_i32, %arg1 : i32, i32
  }
  func.func @transform_2(%arg0: i32, %arg1: i32) -> (i32, i32) {
    %c0_i32 = arith.constant 0 : i32
    return %arg0, %arg1 : i32, i32
  }
}

</mosaic_0001>

<llo_original>
// kernel: linear_forward.1
$region0: #{linear_forward.1}
  #allocation0 [shape = 'u32[]', space=smem, size = 0x4, offset = 0x4, fixed_abs, tag = 'smem constant byte address 0x4 - core index']
  #allocation1 [shape = 'u32[144,128]{1,0:T(1,128)}', space=vmem, size = 0x12000, scoped, tag = 'internal scratch']
  %s0 = inlined_call_operand.vmem [shape: f32[8,128], index: 0, kind: input, shape index: {}]
  %s1 = inlined_call_operand.vmem [shape: f32[128,128], index: 1, kind: input, shape index: {}]
  %s2 = inlined_call_operand.vmem [shape: f32[8,128], index: 2, kind: output, shape index: {}]
  %s3 = sld [smem:[#allocation0]]
  $region18: #{linear_forward.1} parent=0
    _
  %s5 = ssub.s32 1, %s3
  %s6 = scalar_select 0, %s5, %s3
  // Predicated region
  $region2: #{linear_forward.1} parent=0 // pred_check
    _
  $region3: #{linear_forward.1} parent=0 // pred_check_branch
    %8 = sbr.rel (0) target = $region5
  $region4: #{linear_forward.1} parent=0 // pred_region
    _
  $region5: #{linear_forward.1} parent=0 // pred_fallthru
    _
  // Predicated region
  $region6: #{linear_forward.1} parent=0 // pred_check
    _
  $region7: #{linear_forward.1} parent=0 // pred_check_branch
    %10 = sbr.rel (0) target = $region9
  $region8: #{linear_forward.1} parent=0 // pred_region
    _
  $region9: #{linear_forward.1} parent=0 // pred_fallthru
    _
  %v11 = vld [vmem:[%s0] sm:$0xff]
  %v12 = vld [vmem:[%s1] sm:$0xff]
  %v13 = vld [vmem:[%s1 + $0x8] sm:$0xff]
  %v14 = vld [vmem:[%s1 + $0x10] sm:$0xff]
  %v15 = vld [vmem:[%s1 + $0x18] sm:$0xff]
  %v16 = vld [vmem:[%s1 + $0x20] sm:$0xff]
  %v17 = vld [vmem:[%s1 + $0x28] sm:$0xff]
  %v18 = vld [vmem:[%s1 + $0x30] sm:$0xff]
  %v19 = vld [vmem:[%s1 + $0x38] sm:$0xff]
  %v20 = vld [vmem:[%s1 + $0x40] sm:$0xff]
  %v21 = vld [vmem:[%s1 + $0x48] sm:$0xff]
  %v22 = vld [vmem:[%s1 + $0x50] sm:$0xff]
  %v23 = vld [vmem:[%s1 + $0x58] sm:$0xff]
  %v24 = vld [vmem:[%s1 + $0x60] sm:$0xff]
  %v25 = vld [vmem:[%s1 + $0x68] sm:$0xff]
  %v26 = vld [vmem:[%s1 + $0x70] sm:$0xff]
  %v27 = vld [vmem:[%s1 + $0x78] sm:$0xff]
  %28 = vmatprep.subr.mxu0 0.0
  %29 = vmatpush1.msra.mxu0 %v12
  %30 = vmatprep.subr.mxu0 0.0
  %31 = vmatpush1.msra.mxu0 %v13
  %32 = vmatprep.subr.mxu0 0.0
  %33 = vmatpush1.msra.mxu0 %v14
  %34 = vmatprep.subr.mxu0 0.0
  %35 = vmatpush1.msra.mxu0 %v15
  %36 = vmatprep.subr.mxu0 0.0
  %37 = vmatpush1.msra.mxu0 %v16
  %38 = vmatprep.subr.mxu0 0.0
  %39 = vmatpush1.msra.mxu0 %v17
  %40 = vmatprep.subr.mxu0 0.0
  %41 = vmatpush1.msra.mxu0 %v18
  %42 = vmatprep.subr.mxu0 0.0
  %43 = vmatpush1.msra.mxu0 %v19
  %44 = vmatprep.subr.mxu0 0.0
  %45 = vmatpush1.msra.mxu0 %v20
  %46 = vmatprep.subr.mxu0 0.0
  %47 = vmatpush1.msra.mxu0 %v21
  %48 = vmatprep.subr.mxu0 0.0
  %49 = vmatpush1.msra.mxu0 %v22
  %50 = vmatprep.subr.mxu0 0.0
  %51 = vmatpush1.msra.mxu0 %v23
  %52 = vmatprep.subr.mxu0 0.0
  %53 = vmatpush1.msra.mxu0 %v24
  %54 = vmatprep.subr.mxu0 0.0
  %55 = vmatpush1.msra.mxu0 %v25
  %56 = vmatprep.subr.mxu0 0.0
  %57 = vmatpush1.msra.mxu0 %v26
  %58 = vmatprep.subr.mxu0 0.0
  %59 = vmatpush1.msra.mxu0 %v27
  %60 = vmatprep.subr.mxu0 0.0
  %61 = vmatpush1.msra.mxu0 0.0
  %62 = vmatprep.subr.mxu0 0.0
  %63 = vmatpush1.msra.mxu0 0.0
  %64 = vmatprep.subr.mxu0 0.0
  %65 = vmatpush1.msra.mxu0 0.0
  %66 = vmatprep.subr.mxu0 0.0
  %67 = vmatpush1.msra.mxu0 0.0
  %68 = vmatprep.subr.mxu0 0.0
  %69 = vmatpush1.msra.mxu0 0.0
  %70 = vmatprep.subr.mxu0 0.0
  %71 = vmatpush1.msra.mxu0 0.0
  %72 = vmatprep.subr.mxu0 0.0
  %73 = vmatpush1.msra.mxu0 0.0
  %74 = vmatprep.subr.mxu0 0.0
  %75 = vmatpush1.msra.mxu0 0.0
  %76 = vmatprep.subr.mxu0 0.0
  %77 = vmatpush1.msra.mxu0 0.0
  %78 = vmatprep.subr.mxu0 0.0
  %79 = vmatpush1.msra.mxu0 0.0
  %80 = vmatprep.subr.mxu0 0.0
  %81 = vmatpush1.msra.mxu0 0.0
  %82 = vmatprep.subr.mxu0 0.0
  %83 = vmatpush1.msra.mxu0 0.0
  %84 = vmatprep.subr.mxu0 0.0
  %85 = vmatpush1.msra.mxu0 0.0
  %86 = vmatprep.subr.mxu0 0.0
  %87 = vmatpush1.msra.mxu0 0.0
  %88 = vmatprep.subr.mxu0 0.0
  %89 = vmatpush1.msra.mxu0 0.0
  %90 = vmatprep.subr.mxu0 0.0
  %91 = vmatpush1.msra.mxu0 0.0
  %92 = vmatprep.mubr.f32.mxu0 0.0
  %93 = vmatmul.mubr.f32.gmra.mrb[0].mxu0 %v11
  %v94 = vpop.f32.mrb[0].mxu0
  %v95 = vadd.f32 0.0, %v94
  %v96 = vpop.f32.mrb[0].mxu0
  %97 = vdwg.mxu0
  %98 = vst [vmem:[%s2] sm:$0xff] %v95
  // Predicated region
  $region10: #{linear_forward.1} parent=0 // pred_check
    _
  $region11: #{linear_forward.1} parent=0 // pred_check_branch
    %100 = sbr.rel (0) target = $region13
  $region12: #{linear_forward.1} parent=0 // pred_region
    _
  $region13: #{linear_forward.1} parent=0 // pred_fallthru
    _
  // Predicated region
  $region14: #{linear_forward.1} parent=0 // pred_check
    _
  $region15: #{linear_forward.1} parent=0 // pred_check_branch
    %102 = sbr.rel (0) target = $region17
  $region16: #{linear_forward.1} parent=0 // pred_region
    _
  $region17: #{linear_forward.1} parent=0 // pred_fallthru
    _

</llo_original>
